<compile_context>
chip_gen: v7x
topology: tpu7x:2x2x1
jax: 0.10.0
libtpu: 0.0.40
codegen_flags: <defaults>
</compile_context>

<pallas_src>
import functools

import jax
import jax.numpy as jnp
from jax.experimental import pallas as pl
from jax.experimental.pallas import tpu as pltpu

LANES = 128
MAX_TILE_ROWS = 4096      # (4096, 128) f32 block = 2 MiB per input per step.


def _fold_to_acc(v, acc_rows):
    """Fold a (rows, 128) f32 tile to the (acc_rows, 128) accumulator shape with
    pure vreg adds (reduction over the leading, non-lane/non-sublane axis)."""
    rows, cols = v.shape
    if rows == acc_rows:
        return v
    return v.reshape(rows // acc_rows, acc_rows, cols).sum(axis=0)


def _loss_kernel(x_ref, t_ref, out_ref, acc_bce, acc_inter, acc_total, *,
                 n_valid):
    c = pl.program_id(0)                 # TensorCore-split axis
    i = pl.program_id(1)                 # row-tile axis (reduction)
    tiles_per_core = pl.num_programs(1)

    @pl.when(i == 0)
    def _init():
        acc_bce[...] = jnp.zeros_like(acc_bce)
        acc_inter[...] = jnp.zeros_like(acc_inter)
        acc_total[...] = jnp.zeros_like(acc_total)

    x = x_ref[...].astype(jnp.float32)
    t = t_ref[...].astype(jnp.float32)
    rows, cols = x.shape
    acc_rows = acc_bce.shape[0]

    # Share one exp per element between BCE and sigmoid:
    #   e = exp(-|x|)
    #   BCE     = max(x, 0) - x*t + log1p(e)           (PyTorch's stable form)
    #   sigmoid = x >= 0 ? 1/(1+e) : e/(1+e)
    e = jnp.exp(-jnp.abs(x))
    bce = jnp.maximum(x, 0.0) - x * t + jnp.log1p(e)
    r = pl.reciprocal(1.0 + e, approx=True)      # EUP vrcp, off the VALU slot
    s = jnp.where(x >= 0.0, r, e * r)
    inter = s * t
    total = s + t

    # Scalar predicate: does every element of this tile map to a real input
    # element?  True for all tiles except (at most) the last partial tile and
    # any clamped phantom tile of an uneven core split.
    # NOTE: int32 index math limits this kernel to < 2^31 elements.
    tile_idx = c * tiles_per_core + i
    tile_start = tile_idx * (rows * cols)
    fully_valid = tile_start + rows * cols <= n_valid

    @pl.when(fully_valid)
    def _fast():   # no mask math at all on the hot path
        acc_bce[...] += _fold_to_acc(bce, acc_rows)
        acc_inter[...] += _fold_to_acc(inter, acc_rows)
        acc_total[...] += _fold_to_acc(total, acc_rows)

    @pl.when(jnp.logical_not(fully_valid))
    def _masked():
        # Must stay a select (not multiply-by-mask): the Pallas-padded region
        # of a partial block has unspecified contents (possibly NaN/Inf).
        row_ids = jax.lax.broadcasted_iota(jnp.int32, (rows, cols), 0)
        col_ids = jax.lax.broadcasted_iota(jnp.int32, (rows, cols), 1)
        mask = (tile_start + row_ids * cols + col_ids) < n_valid
        acc_bce[...] += _fold_to_acc(jnp.where(mask, bce, 0.0), acc_rows)
        acc_inter[...] += _fold_to_acc(jnp.where(mask, inter, 0.0), acc_rows)
        acc_total[...] += _fold_to_acc(jnp.where(mask, total, 0.0), acc_rows)

    @pl.when(i == tiles_per_core - 1)
    def _finalize():
        out_ref[0, 0] = jnp.sum(acc_bce[...])
        out_ref[0, 1] = jnp.sum(acc_inter[...])
        out_ref[0, 2] = jnp.sum(acc_total[...])


def _tensorcores_per_chip():
    """TensorCores to split across: 2 on v7x, else 1.  (v4/v5p megacore pairs
    are already fused by the runtime; plain "parallel" covers them.)"""
    try:
        kind = jax.devices()[0].device_kind.lower()
    except Exception:
        return 1
    return 2 if "v7" in kind else 1


def _partial_sums(x2d, t2d, n_valid, num_cores, tiles_per_core, tile_rows,
                  num_tiles):
    # One-vreg accumulators when the tile folds cleanly; otherwise (tiny inputs
    # whose row count is not a multiple of 8) fall back to a tile-shaped one.
    acc_rows = 8 if tile_rows % 8 == 0 else tile_rows

    def in_index_map(c, i):
        # Clamp so phantom tiles of an uneven core split never index OOB
        # blocks; their contribution is masked to zero in-kernel.
        return (jnp.minimum(c * tiles_per_core + i, num_tiles - 1), 0)

    kernel = functools.partial(_loss_kernel, n_valid=n_valid)

    def call(core_axis_sem):
        return pl.pallas_call(
            kernel,
            out_shape=jax.ShapeDtypeStruct((num_cores, 3), jnp.float32),
            grid_spec=pltpu.PrefetchScalarGridSpec(
                num_scalar_prefetch=0,
                grid=(num_cores, tiles_per_core),
                in_specs=[
                    pl.BlockSpec((tile_rows, LANES), in_index_map),
                    pl.BlockSpec((tile_rows, LANES), in_index_map),
                ],
                out_specs=pl.BlockSpec(
                    (1, 3), lambda c, i: (c, 0),
                    memory_space=pltpu.MemorySpace.SMEM),
                scratch_shapes=[
                    pltpu.VMEM((acc_rows, LANES), jnp.float32),
                    pltpu.VMEM((acc_rows, LANES), jnp.float32),
                    pltpu.VMEM((acc_rows, LANES), jnp.float32),
                ],
            ),
            compiler_params=pltpu.CompilerParams(
                dimension_semantics=(core_axis_sem, pltpu.ARBITRARY),
                vmem_limit_bytes=32 * 1024 * 1024),
        )(x2d, t2d)

    if num_cores > 1:
        # Make sure the core-split axis genuinely shards across both
        # TensorCores on v7x; fall back to plain "parallel" if unsupported.
        try:
            return call(pltpu.CORE_PARALLEL)
        except Exception:
            return call(pltpu.PARALLEL)
    return call(pltpu.PARALLEL)


def bce_plus_iou_loss(inputs, targets, *, bce_weight=0.5, iou_weight=0.5,
                      smooth=1.0, max_tile_rows=MAX_TILE_ROWS):
    assert inputs.shape == targets.shape
    n = int(inputs.size)
    assert n > 0

    x_flat = inputs.reshape(-1)
    t_flat = targets.reshape(-1)

    # 128-divisible prefix goes through the kernel; the <128-element tail (if
    # any) is reduced with plain jnp -- no full-tensor pad copy in the wrapper.
    n_main = (n // LANES) * LANES
    sums = jnp.zeros((3,), jnp.float32)
    if n_main < n:
        xt = x_flat[n_main:].astype(jnp.float32)
        tt = t_flat[n_main:].astype(jnp.float32)
        st = jax.nn.sigmoid(xt)
        sums = sums + jnp.stack([
            jnp.sum(jnp.maximum(xt, 0.0) - xt * tt
                    + jnp.log1p(jnp.exp(-jnp.abs(xt)))),
            jnp.sum(st * tt),
            jnp.sum(st + tt),
        ])

    if n_main > 0:
        rows = n_main // LANES
        x_main = x_flat if n_main == n else x_flat[:n_main]
        t_main = t_flat if n_main == n else t_flat[:n_main]
        x2d = x_main.reshape(rows, LANES)   # contiguous reshape (bitcast)
        t2d = t_main.reshape(rows, LANES)

        tile_rows = min(max_tile_rows, rows)
        if tile_rows < rows:
            # Multi-tile path: block's sublane dim must be a multiple of 8.
            tile_rows = max(8, (tile_rows // 8) * 8)
        num_tiles = pl.cdiv(rows, tile_rows)
        num_cores = max(1, min(_tensorcores_per_chip(), num_tiles))
        tiles_per_core = pl.cdiv(num_tiles, num_cores)

        partials = _partial_sums(x2d, t2d, n_main, num_cores, tiles_per_core,
                                 tile_rows, num_tiles)
        sums = sums + jnp.sum(partials, axis=0)

    # Final (nonlinear) scalar combine in the wrapper.
    bce_mean = sums[0] / n
    intersection = sums[1]
    union = sums[2] - intersection
    iou_loss = 1.0 - (intersection + smooth) / (union + smooth)
    return bce_weight * bce_mean + iou_weight * iou_loss


def _reference(inputs, targets, bce_weight=0.5, iou_weight=0.5, smooth=1.0):
    x = inputs.astype(jnp.float32).reshape(-1)
    t = targets.astype(jnp.float32).reshape(-1)
    bce = jnp.mean(jnp.maximum(x, 0.0) - x * t + jnp.log1p(jnp.exp(-jnp.abs(x))))
    s = jax.nn.sigmoid(x)
    inter = jnp.sum(s * t)
    union = jnp.sum(s + t) - inter
    iou_loss = 1.0 - (inter + smooth) / (union + smooth)
    return bce_weight * bce + iou_weight * iou_loss


if __name__ == "__main__":
    key = jax.random.PRNGKey(0)
    k1, k2, k3, k4 = jax.random.split(key, 4)

    # Segmentation logits / binary mask pair (NCHW): 2*4*16*16 = 2048 elements.
    inputs = jax.random.normal(k1, (2, 4, 16, 16), dtype=jnp.float32)
    targets = jax.random.bernoulli(k2, 0.5, (2, 4, 16, 16)).astype(jnp.float32)

    loss = jax.block_until_ready(bce_plus_iou_loss(inputs, targets))
    ref = _reference(inputs, targets)
    # Tolerance covers pl.reciprocal(approx=True) (~2^-12 rel) in the sigmoid.
    assert jnp.allclose(loss, ref, rtol=1e-3, atol=1e-3), (loss, ref)

    # Exercise the multi-tile path (fast path + masked partial last tile, plus
    # phantom-tile masking on multi-TC chips): 2*4*16*20 = 2560 elements =
    # 20 lane-rows, tiled at 8 rows -> 3 tiles.
    inputs2 = jax.random.normal(k3, (2, 4, 16, 20), dtype=jnp.float32)
    targets2 = jax.random.bernoulli(k4, 0.5, (2, 4, 16, 20)).astype(jnp.float32)
    loss2 = jax.block_until_ready(
        bce_plus_iou_loss(inputs2, targets2, max_tile_rows=8))
    ref2 = _reference(inputs2, targets2)
    assert jnp.allclose(loss2, ref2, rtol=1e-3, atol=1e-3), (loss2, ref2)

    print("KERNEL_OK")
</pallas_src>

<mosaic_0001>
module attributes {stable_mosaic.version = 11 : i64} {
  func.func @_loss_kernel(%arg0: i32, %arg1: i32, %arg2: memref<16x128xf32, #tpu.memory_space<vmem>>, %arg3: memref<16x128xf32, #tpu.memory_space<vmem>>, %arg4: memref<1x3xf32, #tpu.memory_space<smem>>, %arg5: memref<8x128xf32, #tpu.memory_space<vmem>>, %arg6: memref<8x128xf32, #tpu.memory_space<vmem>>, %arg7: memref<8x128xf32, #tpu.memory_space<vmem>>) attributes {dimension_semantics = [#tpu.dimension_semantics<parallel>, #tpu.dimension_semantics<arbitrary>], iteration_bounds = array<i64: 1, 1>, scalar_prefetch = 0 : i64, scratch_operands = 3 : i64, tpu.core_type = #tpu.core_type<tc>, window_params = [{transform_indices = @transform_0, window_bounds = array<i64: 16, 128>}, {transform_indices = @transform_1, window_bounds = array<i64: 16, 128>}, {transform_indices = @transform_2, window_bounds = array<i64: 1, 3>}]} {
    %c0_i32 = arith.constant 0 : i32
    %0 = arith.cmpi eq, %arg1, %c0_i32 : i32
    %1 = arith.extui %0 : i1 to i32
    %c0_i32_0 = arith.constant 0 : i32
    %2 = arith.cmpi ne, %1, %c0_i32_0 : i32
    scf.if %2 {
      %cst_13 = arith.constant 0.000000e+00 : f32
      %37 = vector.broadcast %cst_13 : f32 to vector<8x128xf32>
      %c0_14 = arith.constant 0 : index
      %c0_15 = arith.constant 0 : index
      %38 = vector.load %arg5[%c0_14, %c0_15] : memref<8x128xf32, #tpu.memory_space<vmem>>, vector<8x128xf32>
      tpu.vector_store %arg5[%c0_14, %c0_15], %37 {strides = array<i32>} : memref<8x128xf32, #tpu.memory_space<vmem>>, vector<8x128xf32>,
      %cst_16 = arith.constant 0.000000e+00 : f32
      %39 = vector.broadcast %cst_16 : f32 to vector<8x128xf32>
      %c0_17 = arith.constant 0 : index
      %c0_18 = arith.constant 0 : index
      %40 = vector.load %arg6[%c0_17, %c0_18] : memref<8x128xf32, #tpu.memory_space<vmem>>, vector<8x128xf32>
      tpu.vector_store %arg6[%c0_17, %c0_18], %39 {strides = array<i32>} : memref<8x128xf32, #tpu.memory_space<vmem>>, vector<8x128xf32>,
      %cst_19 = arith.constant 0.000000e+00 : f32
      %41 = vector.broadcast %cst_19 : f32 to vector<8x128xf32>
      %c0_20 = arith.constant 0 : index
      %c0_21 = arith.constant 0 : index
      %42 = vector.load %arg7[%c0_20, %c0_21] : memref<8x128xf32, #tpu.memory_space<vmem>>, vector<8x128xf32>
      tpu.vector_store %arg7[%c0_20, %c0_21], %41 {strides = array<i32>} : memref<8x128xf32, #tpu.memory_space<vmem>>, vector<8x128xf32>,
    } else {
    }
    %c0 = arith.constant 0 : index
    %c0_1 = arith.constant 0 : index
    %3 = vector.load %arg2[%c0, %c0_1] : memref<16x128xf32, #tpu.memory_space<vmem>>, vector<16x128xf32>
    %c0_2 = arith.constant 0 : index
    %c0_3 = arith.constant 0 : index
    %4 = vector.load %arg3[%c0_2, %c0_3] : memref<16x128xf32, #tpu.memory_space<vmem>>, vector<16x128xf32>
    %5 = math.absf %3 : vector<16x128xf32>
    %cst = arith.constant 0.000000e+00 : f32
    %6 = vector.broadcast %cst : f32 to vector<16x128xf32>
    %7 = arith.subf %6, %5 : vector<16x128xf32>
    %8 = math.exp %7 : vector<16x128xf32>
    %cst_4 = arith.constant 0.000000e+00 : f32
    %9 = vector.broadcast %cst_4 : f32 to vector<16x128xf32>
    %10 = arith.maximumf %3, %9 : vector<16x128xf32>
    %11 = arith.mulf %3, %4 : vector<16x128xf32>
    %12 = arith.subf %10, %11 : vector<16x128xf32>
    %13 = math.log1p %8 : vector<16x128xf32>
    %14 = arith.addf %12, %13 : vector<16x128xf32>
    %cst_5 = arith.constant 1.000000e+00 : f32
    %15 = vector.broadcast %cst_5 : f32 to vector<16x128xf32>
    %16 = arith.addf %15, %8 : vector<16x128xf32>
    %17 = tpu.reciprocal %16 {approx = true} : vector<16x128xf32> -> vector<16x128xf32>
    %cst_6 = arith.constant 0.000000e+00 : f32
    %18 = vector.broadcast %cst_6 : f32 to vector<16x128xf32>
    %19 = arith.cmpf oge, %3, %18 : vector<16x128xf32>
    %20 = arith.mulf %8, %17 : vector<16x128xf32>
    %21 = arith.select %19, %17, %20 : vector<16x128xi1>, vector<16x128xf32>
    %22 = arith.mulf %21, %4 : vector<16x128xf32>
    %23 = arith.addf %21, %4 : vector<16x128xf32>
    %c1_i32 = arith.constant 1 : i32
    %24 = arith.muli %arg0, %c1_i32 : i32
    %25 = arith.addi %24, %arg1 : i32
    %c2048_i32 = arith.constant 2048 : i32
    %26 = arith.muli %25, %c2048_i32 : i32
    %c2048_i32_7 = arith.constant 2048 : i32
    %27 = arith.addi %26, %c2048_i32_7 : i32
    %c2048_i32_8 = arith.constant 2048 : i32
    %28 = arith.cmpi sle, %27, %c2048_i32_8 : i32
    %29 = arith.extui %28 : i1 to i32
    %c0_i32_9 = arith.constant 0 : i32
    %30 = arith.cmpi ne, %29, %c0_i32_9 : i32
    scf.if %30 {
      %c0_13 = arith.constant 0 : index
      %c0_14 = arith.constant 0 : index
      %37 = vector.load %arg5[%c0_13, %c0_14] : memref<8x128xf32, #tpu.memory_space<vmem>>, vector<8x128xf32>
      %38 = vector.shape_cast %14 : vector<16x128xf32> to vector<2x8x128xf32>
      %cst_15 = arith.constant dense<0.000000e+00> : vector<8x128xf32>
      %39 = vector.multi_reduction <add>, %38, %cst_15 [0] : vector<2x8x128xf32> to vector<8x128xf32>
      %40 = arith.addf %37, %39 : vector<8x128xf32>
      %c0_16 = arith.constant 0 : index
      %c0_17 = arith.constant 0 : index
      %41 = vector.load %arg5[%c0_16, %c0_17] : memref<8x128xf32, #tpu.memory_space<vmem>>, vector<8x128xf32>
      tpu.vector_store %arg5[%c0_16, %c0_17], %40 {strides = array<i32>} : memref<8x128xf32, #tpu.memory_space<vmem>>, vector<8x128xf32>,
      %c0_18 = arith.constant 0 : index
      %c0_19 = arith.constant 0 : index
      %42 = vector.load %arg6[%c0_18, %c0_19] : memref<8x128xf32, #tpu.memory_space<vmem>>, vector<8x128xf32>
      %43 = vector.shape_cast %22 : vector<16x128xf32> to vector<2x8x128xf32>
      %cst_20 = arith.constant dense<0.000000e+00> : vector<8x128xf32>
      %44 = vector.multi_reduction <add>, %43, %cst_20 [0] : vector<2x8x128xf32> to vector<8x128xf32>
      %45 = arith.addf %42, %44 : vector<8x128xf32>
      %c0_21 = arith.constant 0 : index
      %c0_22 = arith.constant 0 : index
      %46 = vector.load %arg6[%c0_21, %c0_22] : memref<8x128xf32, #tpu.memory_space<vmem>>, vector<8x128xf32>
      tpu.vector_store %arg6[%c0_21, %c0_22], %45 {strides = array<i32>} : memref<8x128xf32, #tpu.memory_space<vmem>>, vector<8x128xf32>,
      %c0_23 = arith.constant 0 : index
      %c0_24 = arith.constant 0 : index
      %47 = vector.load %arg7[%c0_23, %c0_24] : memref<8x128xf32, #tpu.memory_space<vmem>>, vector<8x128xf32>
      %48 = vector.shape_cast %23 : vector<16x128xf32> to vector<2x8x128xf32>
      %cst_25 = arith.constant dense<0.000000e+00> : vector<8x128xf32>
      %49 = vector.multi_reduction <add>, %48, %cst_25 [0] : vector<2x8x128xf32> to vector<8x128xf32>
      %50 = arith.addf %47, %49 : vector<8x128xf32>
      %c0_26 = arith.constant 0 : index
      %c0_27 = arith.constant 0 : index
      %51 = vector.load %arg7[%c0_26, %c0_27] : memref<8x128xf32, #tpu.memory_space<vmem>>, vector<8x128xf32>
      tpu.vector_store %arg7[%c0_26, %c0_27], %50 {strides = array<i32>} : memref<8x128xf32, #tpu.memory_space<vmem>>, vector<8x128xf32>,
    } else {
    }
    %true = arith.constant true
    %31 = arith.xori %28, %true : i1
    %32 = arith.extui %31 : i1 to i32
    %c0_i32_10 = arith.constant 0 : i32
    %33 = arith.cmpi ne, %32, %c0_i32_10 : i32
    scf.if %33 {
      %37 = tpu.iota {dimensions = array<i32: 0>} : vector<16x128xi32>
      %38 = tpu.iota {dimensions = array<i32: 1>} : vector<16x128xi32>
      %c128_i32 = arith.constant 128 : i32
      %39 = vector.broadcast %c128_i32 : i32 to vector<16x128xi32>
      %40 = arith.muli %37, %39 : vector<16x128xi32>
      %41 = vector.broadcast %26 : i32 to vector<16x128xi32>
      %42 = arith.addi %41, %40 : vector<16x128xi32>
      %43 = arith.addi %42, %38 : vector<16x128xi32>
      %c2048_i32_13 = arith.constant 2048 : i32
      %44 = vector.broadcast %c2048_i32_13 : i32 to vector<16x128xi32>
      %45 = arith.cmpi slt, %43, %44 : vector<16x128xi32>
      %c0_14 = arith.constant 0 : index
      %c0_15 = arith.constant 0 : index
      %46 = vector.load %arg5[%c0_14, %c0_15] : memref<8x128xf32, #tpu.memory_space<vmem>>, vector<8x128xf32>
      %cst_16 = arith.constant 0.000000e+00 : f32
      %47 = vector.broadcast %cst_16 : f32 to vector<16x128xf32>
      %48 = arith.select %45, %14, %47 : vector<16x128xi1>, vector<16x128xf32>
      %49 = vector.shape_cast %48 : vector<16x128xf32> to vector<2x8x128xf32>
      %cst_17 = arith.constant dense<0.000000e+00> : vector<8x128xf32>
      %50 = vector.multi_reduction <add>, %49, %cst_17 [0] : vector<2x8x128xf32> to vector<8x128xf32>
      %51 = arith.addf %46, %50 : vector<8x128xf32>
      %c0_18 = arith.constant 0 : index
      %c0_19 = arith.constant 0 : index
      %52 = vector.load %arg5[%c0_18, %c0_19] : memref<8x128xf32, #tpu.memory_space<vmem>>, vector<8x128xf32>
      tpu.vector_store %arg5[%c0_18, %c0_19], %51 {strides = array<i32>} : memref<8x128xf32, #tpu.memory_space<vmem>>, vector<8x128xf32>,
      %c0_20 = arith.constant 0 : index
      %c0_21 = arith.constant 0 : index
      %53 = vector.load %arg6[%c0_20, %c0_21] : memref<8x128xf32, #tpu.memory_space<vmem>>, vector<8x128xf32>
      %cst_22 = arith.constant 0.000000e+00 : f32
      %54 = vector.broadcast %cst_22 : f32 to vector<16x128xf32>
      %55 = arith.select %45, %22, %54 : vector<16x128xi1>, vector<16x128xf32>
      %56 = vector.shape_cast %55 : vector<16x128xf32> to vector<2x8x128xf32>
      %cst_23 = arith.constant dense<0.000000e+00> : vector<8x128xf32>
      %57 = vector.multi_reduction <add>, %56, %cst_23 [0] : vector<2x8x128xf32> to vector<8x128xf32>
      %58 = arith.addf %53, %57 : vector<8x128xf32>
      %c0_24 = arith.constant 0 : index
      %c0_25 = arith.constant 0 : index
      %59 = vector.load %arg6[%c0_24, %c0_25] : memref<8x128xf32, #tpu.memory_space<vmem>>, vector<8x128xf32>
      tpu.vector_store %arg6[%c0_24, %c0_25], %58 {strides = array<i32>} : memref<8x128xf32, #tpu.memory_space<vmem>>, vector<8x128xf32>,
      %c0_26 = arith.constant 0 : index
      %c0_27 = arith.constant 0 : index
      %60 = vector.load %arg7[%c0_26, %c0_27] : memref<8x128xf32, #tpu.memory_space<vmem>>, vector<8x128xf32>
      %cst_28 = arith.constant 0.000000e+00 : f32
      %61 = vector.broadcast %cst_28 : f32 to vector<16x128xf32>
      %62 = arith.select %45, %23, %61 : vector<16x128xi1>, vector<16x128xf32>
      %63 = vector.shape_cast %62 : vector<16x128xf32> to vector<2x8x128xf32>
      %cst_29 = arith.constant dense<0.000000e+00> : vector<8x128xf32>
      %64 = vector.multi_reduction <add>, %63, %cst_29 [0] : vector<2x8x128xf32> to vector<8x128xf32>
      %65 = arith.addf %60, %64 : vector<8x128xf32>
      %c0_30 = arith.constant 0 : index
      %c0_31 = arith.constant 0 : index
      %66 = vector.load %arg7[%c0_30, %c0_31] : memref<8x128xf32, #tpu.memory_space<vmem>>, vector<8x128xf32>
      tpu.vector_store %arg7[%c0_30, %c0_31], %65 {strides = array<i32>} : memref<8x128xf32, #tpu.memory_space<vmem>>, vector<8x128xf32>,
    } else {
    }
    %c0_i32_11 = arith.constant 0 : i32
    %34 = arith.cmpi eq, %arg1, %c0_i32_11 : i32
    %35 = arith.extui %34 : i1 to i32
    %c0_i32_12 = arith.constant 0 : i32
    %36 = arith.cmpi ne, %35, %c0_i32_12 : i32
    scf.if %36 {
      %c0_13 = arith.constant 0 : index
      %c0_14 = arith.constant 0 : index
      %37 = vector.load %arg5[%c0_13, %c0_14] : memref<8x128xf32, #tpu.memory_space<vmem>>, vector<8x128xf32>
      %38 = vector.shape_cast %37 : vector<8x128xf32> to vector<1x8x128xf32>
      %cst_15 = arith.constant dense<0.000000e+00> : vector<1xf32>
      %39 = vector.multi_reduction <add>, %38, %cst_15 [1, 2] : vector<1x8x128xf32> to vector<1xf32>
      %40 = vector.shape_cast %39 : vector<1xf32> to vector<1x1x1xf32>
      %41 = vector.extract %40[0, 0, 0] : f32 from vector<1x1x1xf32>
      %c0_16 = arith.constant 0 : index
      %c0_17 = arith.constant 0 : index
      %42 = memref.load %arg4[%c0_16, %c0_17] : memref<1x3xf32, #tpu.memory_space<smem>>
      memref.store %41, %arg4[%c0_16, %c0_17] : memref<1x3xf32, #tpu.memory_space<smem>>
      %c0_18 = arith.constant 0 : index
      %c0_19 = arith.constant 0 : index
      %43 = vector.load %arg6[%c0_18, %c0_19] : memref<8x128xf32, #tpu.memory_space<vmem>>, vector<8x128xf32>
      %44 = vector.shape_cast %43 : vector<8x128xf32> to vector<1x8x128xf32>
      %cst_20 = arith.constant dense<0.000000e+00> : vector<1xf32>
      %45 = vector.multi_reduction <add>, %44, %cst_20 [1, 2] : vector<1x8x128xf32> to vector<1xf32>
      %46 = vector.shape_cast %45 : vector<1xf32> to vector<1x1x1xf32>
      %47 = vector.extract %46[0, 0, 0] : f32 from vector<1x1x1xf32>
      %c0_21 = arith.constant 0 : index
      %c1 = arith.constant 1 : index
      %48 = memref.load %arg4[%c0_21, %c1] : memref<1x3xf32, #tpu.memory_space<smem>>
      memref.store %47, %arg4[%c0_21, %c1] : memref<1x3xf32, #tpu.memory_space<smem>>
      %c0_22 = arith.constant 0 : index
      %c0_23 = arith.constant 0 : index
      %49 = vector.load %arg7[%c0_22, %c0_23] : memref<8x128xf32, #tpu.memory_space<vmem>>, vector<8x128xf32>
      %50 = vector.shape_cast %49 : vector<8x128xf32> to vector<1x8x128xf32>
      %cst_24 = arith.constant dense<0.000000e+00> : vector<1xf32>
      %51 = vector.multi_reduction <add>, %50, %cst_24 [1, 2] : vector<1x8x128xf32> to vector<1xf32>
      %52 = vector.shape_cast %51 : vector<1xf32> to vector<1x1x1xf32>
      %53 = vector.extract %52[0, 0, 0] : f32 from vector<1x1x1xf32>
      %c0_25 = arith.constant 0 : index
      %c2 = arith.constant 2 : index
      %54 = memref.load %arg4[%c0_25, %c2] : memref<1x3xf32, #tpu.memory_space<smem>>
      memref.store %53, %arg4[%c0_25, %c2] : memref<1x3xf32, #tpu.memory_space<smem>>
    } else {
    }
    return
  }
  func.func @transform_0(%arg0: i32, %arg1: i32) -> (i32, i32) {
    %c1_i32 = arith.constant 1 : i32
    %0 = arith.muli %arg0, %c1_i32 : i32
    %1 = arith.addi %0, %arg1 : i32
    %c0_i32 = arith.constant 0 : i32
    %2 = arith.minsi %1, %c0_i32 : i32
    %c0_i32_0 = arith.constant 0 : i32
    %c0_i32_1 = arith.constant 0 : i32
    return %2, %c0_i32_0 : i32, i32
  }
  func.func @transform_1(%arg0: i32, %arg1: i32) -> (i32, i32) {
    %c1_i32 = arith.constant 1 : i32
    %0 = arith.muli %arg0, %c1_i32 : i32
    %1 = arith.addi %0, %arg1 : i32
    %c0_i32 = arith.constant 0 : i32
    %2 = arith.minsi %1, %c0_i32 : i32
    %c0_i32_0 = arith.constant 0 : i32
    %c0_i32_1 = arith.constant 0 : i32
    return %2, %c0_i32_0 : i32, i32
  }
  func.func @transform_2(%arg0: i32, %arg1: i32) -> (i32, i32) {
    %c0_i32 = arith.constant 0 : i32
    %c0_i32_0 = arith.constant 0 : i32
    return %arg0, %c0_i32 : i32, i32
  }
}

</mosaic_0001>

<llo_original>
// kernel: tpu_custom_call.1
$region0: #{tpu_custom_call.1}
  #allocation0 [shape = 'u32[]', space=smem, size = 0x4, offset = 0x4, fixed_abs, tag = 'smem constant byte address 0x4 - core index']
  #allocation1 [shape = 'u32[144,128]{1,0:T(1,128)}', space=vmem, size = 0x12000, scoped, tag = 'internal scratch']
  #allocation2 [shape = 'f32[8,128]{1,0:T(8,128)}', space=vmem, size = 0x1000, scoped, tag = 'scratch operand']
  #allocation3 [shape = 'f32[8,128]{1,0:T(8,128)}', space=vmem, size = 0x1000, scoped, tag = 'scratch operand']
  #allocation4 [shape = 'f32[8,128]{1,0:T(8,128)}', space=vmem, size = 0x1000, scoped, tag = 'scratch operand']
  %s0 = inlined_call_operand.hbm [shape: f32[16,128], index: 0, kind: input, shape index: {}]
  %s1 = inlined_call_operand.hbm [shape: f32[16,128], index: 1, kind: input, shape index: {}]
  %s2 = inlined_call_operand.hbm [shape: f32[1,3], index: 2, kind: output, shape index: {}]
  %s3 = sld [smem:[#allocation0]]
  $region42: #{tpu_custom_call.1} parent=0
    _
  %s5 = ssub.s32 1, %s3
  %s6 = scalar_select 0, %s5, %s3
  $region1: #{tpu_custom_call.1} parent=0
    #allocation5 [shape = 'u8[8192]{0}', space=vmem, size = 0x2000, scoped, tag = 'input window, operand 0, single buffered']
    #allocation6 [shape = 's32[1]{0}', space=sflag, size = 0x4, scoped, tag = 'scoped memory for tpu_custom_call.1']
    #allocation7 [shape = 's32[1]{0}', space=sflag, size = 0x4, scoped, tag = 'scoped memory for tpu_custom_call.1']
    #allocation8 [shape = 'u8[8192]{0}', space=vmem, size = 0x2000, scoped, tag = 'input window, operand 1, single buffered']
    #allocation9 [shape = 's32[1]{0}', space=sflag, size = 0x4, scoped, tag = 'scoped memory for tpu_custom_call.1']
    #allocation10 [shape = 'u8[512]{0}', space=smem, size = 0x200, scoped, tag = 'output window, operand 0, single buffered']
    %7 = vsyncpa [#allocation6], 0
    %8 = vsyncpa [#allocation9], 0
    %9 = vsyncpa [#allocation7], 0
    // Predicated region
    $region2: #{tpu_custom_call.1} parent=1 // pred_check
      _
    $region3: #{tpu_custom_call.1} parent=1 // pred_check_branch
      %11 = sbr.rel (0) target = $region5
    $region4: #{tpu_custom_call.1} parent=1 // pred_region
      %s12 = sadd.s32 0, 0
      %p13 = scmp.lt.s32.totalorder %s12, 0
      %s14 = scalar_select %p13, %s12, 0
      %s15 = smul.u32 2, %s14
      %s17 = ssub.s32 256, 256
      %18 = vsyncadd [#allocation6], %s17
      %s19 = smul.addr %s15, 128
      %s20 = scalar_lea.hbm %s0, %s19
      %s21 = sshll.u32 [#allocation5], 4
      %s22 = int_to_ptr.vmem [resolvable:$true] %s21
      %27 = dma.hbm_to_vmem [thread:$0]  %s20, 256, %s22, [#allocation6], 128, 128, 8
    $region5: #{tpu_custom_call.1} parent=1 // pred_fallthru
      _
    // Predicated region
    $region6: #{tpu_custom_call.1} parent=1 // pred_check
      _
    $region7: #{tpu_custom_call.1} parent=1 // pred_check_branch
      %29 = sbr.rel (0) target = $region9
    $region8: #{tpu_custom_call.1} parent=1 // pred_region
      %s30 = sadd.s32 0, 0
      %p31 = scmp.lt.s32.totalorder %s30, 0
      %s32 = scalar_select %p31, %s30, 0
      %s33 = smul.u32 2, %s32
      %s35 = ssub.s32 256, 256
      %36 = vsyncadd [#allocation9], %s35
      %s37 = smul.addr %s33, 128
      %s38 = scalar_lea.hbm %s1, %s37
      %s39 = sshll.u32 [#allocation8], 4
      %s40 = int_to_ptr.vmem [resolvable:$true] %s39
      %45 = dma.hbm_to_vmem [thread:$0]  %s38, 256, %s40, [#allocation9], 128, 128, 8
    $region9: #{tpu_custom_call.1} parent=1 // pred_fallthru
      _
    // Predicated region
    $region10: #{tpu_custom_call.1} parent=1 // pred_check
      _
    $region11: #{tpu_custom_call.1} parent=1 // pred_check_branch
      %47 = sbr.rel (0) target = $region13
    $region12: #{tpu_custom_call.1} parent=1 // pred_region
      %48 = dma.done [#allocation6], 256
    $region13: #{tpu_custom_call.1} parent=1 // pred_fallthru
      _
    // Predicated region
    $region14: #{tpu_custom_call.1} parent=1 // pred_check
      _
    $region15: #{tpu_custom_call.1} parent=1 // pred_check_branch
      %50 = sbr.rel (0) target = $region17
    $region16: #{tpu_custom_call.1} parent=1 // pred_region
      %51 = dma.done [#allocation9], 256
    $region17: #{tpu_custom_call.1} parent=1 // pred_fallthru
      _
    %s52 = sadd.s32 0, 0
    %p53 = scmp.lt.s32.totalorder %s52, 0
    %s54 = scalar_select %p53, %s52, 0
    %s55 = smul.u32 2, %s54
    %s56 = sadd.s32 0, 0
    %p57 = scmp.lt.s32.totalorder %s56, 0
    %s58 = scalar_select %p57, %s56, 0
    %s59 = smul.u32 2, %s58
    %p60 = scmp.eq.s32.totalorder 0, 0
    // Predicated region
    $region18: #{tpu_custom_call.1} parent=1 // pred_check
      %p61 = pneg %p60
    $region19: #{tpu_custom_call.1} parent=1 // pred_check_branch
      %63 = sbr.rel (%p61) target = $region21
    $region20: #{tpu_custom_call.1} parent=1 // pred_region
      %64 = vst [vmem:[#allocation2] sm:$0xff] 0.0
      %65 = vst [vmem:[#allocation3] sm:$0xff] 0.0
      %66 = vst [vmem:[#allocation4] sm:$0xff] 0.0
    $region21: #{tpu_custom_call.1} parent=1 // pred_fallthru
      _
    %v67 = vld [vmem:[#allocation5] sm:$0xff]
    %v68 = vld [vmem:[#allocation5 + $0x8] sm:$0xff]
    %v69 = vld [vmem:[#allocation8] sm:$0xff]
    %v70 = vld [vmem:[#allocation8 + $0x8] sm:$0xff]
    %v71 = vand.u32 2147483647, %v67
    %v72 = vand.u32 2147483647, %v68
    %v73 = vsub.f32 0.0, %v71
    %v74 = vsub.f32 0.0, %v72
    %v75 = vmul.f32 %v73, 1.442695
    %v76 = vpow.pop %v75
    %v77 = vmul.f32 %v74, 1.442695
    %v78 = vpow.pop %v77
    %v79 = vmax.f32 %v67, 0.0
    %v80 = vmax.f32 %v68, 0.0
    %v81 = vmul.f32 %v67, %v69
    %v82 = vmul.f32 %v68, %v70
    %v83 = vsub.f32 %v79, %v81
    %v84 = vsub.f32 %v80, %v82
    %v85 = vadd.f32 %v76, 1.0
    %v86 = vlog2.pop %v85
    %v87 = vmul.f32 %v86, 0.6931472
    %v88 = vmul.f32 -0.5, %v76
    %v89 = vadd.f32 %v88, 1.0
    %v90 = vmul.f32 %v89, %v76
    %v91 = vand.u32 2147483647, %v76
    %vm92 = vcmp.lt.f32.partialorder %v91, 0.0004427343
    %v93 = vsel %vm92, %v90, %v87
    %v94 = vadd.f32 %v78, 1.0
    %v95 = vlog2.pop %v94
    %v96 = vmul.f32 %v95, 0.6931472
    %v97 = vmul.f32 -0.5, %v78
    %v98 = vadd.f32 %v97, 1.0
    %v99 = vmul.f32 %v98, %v78
    %v100 = vand.u32 2147483647, %v78
    %vm101 = vcmp.lt.f32.partialorder %v100, 0.0004427343
    %v102 = vsel %vm101, %v99, %v96
    %v103 = vadd.f32 %v83, %v93
    %v104 = vadd.f32 %v84, %v102
    %v105 = vadd.f32 %v76, 1.0
    %v106 = vadd.f32 %v78, 1.0
    %v107 = vrcp.pop %v105
    %v108 = vrcp.pop %v106
    %vm109 = vcmp.ge.f32.partialorder %v67, 0.0
    %vm110 = vcmp.ge.f32.partialorder %v68, 0.0
    %v111 = vmul.f32 %v76, %v107
    %v112 = vmul.f32 %v78, %v108
    %v113 = vsel %vm109, %v107, %v111
    %v114 = vsel %vm110, %v108, %v112
    %v115 = vmul.f32 %v113, %v69
    %v116 = vmul.f32 %v114, %v70
    %v117 = vadd.f32 %v113, %v69
    %v118 = vadd.f32 %v114, %v70
    %s119 = sadd.s32 0, 0
    %s120 = smul.u32 %s119, 2048
    %s121 = sadd.s32 %s120, 2048
    %p122 = scmp.le.s32.totalorder %s121, 2048
    // Predicated region
    $region22: #{tpu_custom_call.1} parent=1 // pred_check
      %p123 = pneg %p122
    $region23: #{tpu_custom_call.1} parent=1 // pred_check_branch
      %125 = sbr.rel (%p123) target = $region25
    $region24: #{tpu_custom_call.1} parent=1 // pred_region
      %v126 = vld [vmem:[#allocation2] sm:$0xff]
      %v127 = vadd.f32 %v103, %v104
      %v128 = vadd.f32 %v126, %v127
      %129 = vst [vmem:[#allocation2] sm:$0xff] %v128
      %v130 = vld [vmem:[#allocation3] sm:$0xff]
      %v131 = vadd.f32 %v115, %v116
      %v132 = vadd.f32 %v130, %v131
      %133 = vst [vmem:[#allocation3] sm:$0xff] %v132
      %v134 = vld [vmem:[#allocation4] sm:$0xff]
      %v135 = vadd.f32 %v117, %v118
      %v136 = vadd.f32 %v134, %v135
      %137 = vst [vmem:[#allocation4] sm:$0xff] %v136
    $region25: #{tpu_custom_call.1} parent=1 // pred_fallthru
      _
    %p138 = scmp.gt.s32.totalorder %s121, 2048
    // Predicated region
    $region26: #{tpu_custom_call.1} parent=1 // pred_check
      %p139 = pneg %p138
    $region27: #{tpu_custom_call.1} parent=1 // pred_check_branch
      %141 = sbr.rel (%p139) target = $region29
    $region28: #{tpu_custom_call.1} parent=1 // pred_region
      %v142 = vlaneseq
      %v143 = vshrl.u32 %v142, 7
      %v144 = vadd.s32 %v143, 8
      %v145 = vlaneseq
      %v146 = vand.u32 %v145, 127
      %v147 = vmul.u32 %v143, 128
      %v148 = vmul.u32 %v144, 128
      %v149 = vstv %s120
      %v150 = vadd.s32 %v149, %v147
      %v151 = vadd.s32 %v149, %v148
      %v152 = vadd.s32 %v150, %v146
      %v153 = vadd.s32 %v151, %v146
      %vm154 = vcmp.lt.s32.totalorder %v152, 2048
      %vm155 = vcmp.lt.s32.totalorder %v153, 2048
      %v156 = vld [vmem:[#allocation2] sm:$0xff]
      %v157 = vsel %vm154, %v103, 0.0
      %v158 = vsel %vm155, %v104, 0.0
      %v159 = vadd.f32 %v157, %v158
      %v160 = vadd.f32 %v156, %v159
      %161 = vst [vmem:[#allocation2] sm:$0xff] %v160
      %v162 = vld [vmem:[#allocation3] sm:$0xff]
      %v163 = vsel %vm154, %v115, 0.0
      %v164 = vsel %vm155, %v116, 0.0
      %v165 = vadd.f32 %v163, %v164
      %v166 = vadd.f32 %v162, %v165
      %167 = vst [vmem:[#allocation3] sm:$0xff] %v166
      %v168 = vld [vmem:[#allocation4] sm:$0xff]
      %v169 = vsel %vm154, %v117, 0.0
      %v170 = vsel %vm155, %v118, 0.0
      %v171 = vadd.f32 %v169, %v170
      %v172 = vadd.f32 %v168, %v171
      %173 = vst [vmem:[#allocation4] sm:$0xff] %v172
    $region29: #{tpu_custom_call.1} parent=1 // pred_fallthru
      _
    // Predicated region
    $region30: #{tpu_custom_call.1} parent=1 // pred_check
      %p174 = pneg %p60
    $region31: #{tpu_custom_call.1} parent=1 // pred_check_branch
      %176 = sbr.rel (%p174) target = $region33
    $region32: #{tpu_custom_call.1} parent=1 // pred_region
      %v177 = vld [vmem:[#allocation2] sm:$0xff]
      %178 = vadd.xlane.f32.xlu0 %v177
      %v179 = vpop.xlane.xlu0 %178
      %v180 = vrot.slane %v179, 4
      %v181 = vadd.f32 %v179, %v180
      %v182 = vrot.slane %v181, 2
      %v183 = vadd.f32 %v181, %v182
      %v184 = vrot.slane %v183, 1
      %v185 = vadd.f32 %v183, %v184
      %s186 = vtos %v185
      %s187 = scalar_lea.smem [#allocation10], 0
      %188 = sst [smem:[%s187]] %s186
      %v189 = vld [vmem:[#allocation3] sm:$0xff]
      %190 = vadd.xlane.f32.xlu0 %v189
      %v191 = vpop.xlane.xlu0 %190
      %v192 = vrot.slane %v191, 4
      %v193 = vadd.f32 %v191, %v192
      %v194 = vrot.slane %v193, 2
      %v195 = vadd.f32 %v193, %v194
      %v196 = vrot.slane %v195, 1
      %v197 = vadd.f32 %v195, %v196
      %s198 = vtos %v197
      %s199 = scalar_lea.smem [#allocation10], 1
      %200 = sst [smem:[%s199]] %s198
      %v201 = vld [vmem:[#allocation4] sm:$0xff]
      %202 = vadd.xlane.f32.xlu0 %v201
      %v203 = vpop.xlane.xlu0 %202
      %v204 = vrot.slane %v203, 4
      %v205 = vadd.f32 %v203, %v204
      %v206 = vrot.slane %v205, 2
      %v207 = vadd.f32 %v205, %v206
      %v208 = vrot.slane %v207, 1
      %v209 = vadd.f32 %v207, %v208
      %s210 = vtos %v209
      %s211 = scalar_lea.smem [#allocation10], 2
      %212 = sst [smem:[%s211]] %s210
    $region33: #{tpu_custom_call.1} parent=1 // pred_fallthru
      _
    // Predicated region
    $region34: #{tpu_custom_call.1} parent=1 // pred_check
      _
    $region35: #{tpu_custom_call.1} parent=1 // pred_check_branch
      %214 = sbr.rel (0) target = $region37
    $region36: #{tpu_custom_call.1} parent=1 // pred_region
      %s216 = ssub.s32 16, 16
      %217 = vsyncadd [#allocation7], %s216
      %220 = dma.smem_to_hbm [#allocation10], 16, %s2, [#allocation7]
    $region37: #{tpu_custom_call.1} parent=1 // pred_fallthru
      _
    // Predicated region
    $region38: #{tpu_custom_call.1} parent=1 // pred_check
      _
    $region39: #{tpu_custom_call.1} parent=1 // pred_check_branch
      %222 = sbr.rel (0) target = $region41
    $region40: #{tpu_custom_call.1} parent=1 // pred_region
      %223 = dma.done [#allocation7], 16
    $region41: #{tpu_custom_call.1} parent=1 // pred_fallthru
      _
    %224 = sfence
    %225 = vsyncpa [#allocation6], 1
    %226 = vsyncpa [#allocation9], 1
    %227 = vsyncpa [#allocation7], 1

</llo_original>
